<compile_context>
chip_gen: v5e
topology: v5e:2x2
jax: 0.10.0
libtpu: 0.0.40
codegen_flags: <defaults>
</compile_context>

<pallas_src>
import functools

import jax
import jax.numpy as jnp
from jax.experimental import pallas as pl
from jax.experimental.pallas import tpu as pltpu

_EPS = 1e-5                      # PyTorch BatchNorm2d default
_VMEM_LIMIT = 48 * 1024 * 1024   # above 16/32 MiB scoped defaults, below v7x's 64 MiB


# ----------------------------------------------------------------------------
# host-side constant builders (all O(P*(h+w)) or smaller)
# ----------------------------------------------------------------------------
def _lin_matrix(dst, src):
    """(dst, src) bilinear interpolation weights, align_corners=True."""
    d = jnp.arange(dst, dtype=jnp.float32)
    pos = d * (src - 1) / (dst - 1) if dst > 1 else jnp.zeros((dst,), jnp.float32)
    i0 = jnp.floor(pos)
    f = pos - i0
    s = jnp.arange(src, dtype=jnp.float32)[None, :]
    return (jnp.where(s == i0[:, None], 1.0 - f[:, None], 0.0)
            + jnp.where(s == i0[:, None] + 1.0, f[:, None], 0.0))


def _upsample_pixel_weights(h, w, hh, ww):
    """wxu (ww, P), wyu (hh, P) so that up[c,p] = sum_{a,b} high[c,a,b]*wyu[a,p]*wxu[b,p]."""
    rrow = _lin_matrix(h, hh)                      # (h, hh)
    rcol = _lin_matrix(w, ww)                      # (w, ww)
    wxu = jnp.tile(rcol.T, (1, h))                 # (ww, h*w): column j of output -> rcol[j,:]
    wyu = jnp.repeat(rrow.T, w, axis=1)            # (hh, h*w): row i of output -> rrow[i,:]
    return wxu, wyu


def _segment_sum_matrix(C, seg):
    """(C, C*seg) 0/1 matrix summing `seg` consecutive rows per channel."""
    return (jnp.arange(C)[:, None] == (jnp.arange(C * seg)[None, :] // seg)).astype(jnp.float32)


def _pixel_coords(h, w):
    """(2, P): row index and column index of each flattened pixel (exact for P < 2^24)."""
    i = jnp.arange(h * w, dtype=jnp.float32)
    rowf = jnp.floor(i / w)
    colf = i - rowf * w
    return jnp.stack([rowf, colf], axis=0)


def _pack_weights(params, C, cdt):
    """Fuse both delta branches: (2C,C) 1x1 weights and one merged (4, 9*2C) 3x3 weight."""
    R = 2 * C
    w1_1 = params["conv1_w_1"].reshape(C, R)
    w1_2 = params["conv1_w_2"].reshape(C, R)
    w1_lo = jnp.concatenate([w1_1[:, :C], w1_2[:, :C]], axis=0).astype(cdt)   # applied to low
    w1_hi = jnp.concatenate([w1_1[:, C:], w1_2[:, C:]], axis=0).astype(cdt)   # applied to up

    wk1 = jnp.transpose(params["conv3_w_1"], (0, 2, 3, 1))   # (2, ky, kx, C)
    wk2 = jnp.transpose(params["conv3_w_2"], (0, 2, 3, 1))
    w3m = jnp.zeros((4, 3, 3, R), jnp.float32)
    w3m = w3m.at[0:2, :, :, 0:C].set(wk1)                    # d1 uses branch-1 channels
    w3m = w3m.at[2:4, :, :, C:R].set(wk2)                    # d2 uses branch-2 channels
    w3m = w3m.reshape(4, 9 * R).astype(cdt)                  # column = (ky*3+kx)*2C + channel
    return w1_lo, w1_hi, w3m


def _pick_tile(P, max_tile=2048):
    """Largest pixel tile <= max_tile that divides P and is a multiple of 128 (else P)."""
    if P <= max_tile:
        return P
    for t in range(max_tile, 127, -128):
        if P % t == 0:
            return t
    return P


@functools.lru_cache(maxsize=None)
def _roll_matches_jnp():
    """Probe pltpu.roll's shift convention once with a tiny kernel (robustness guard)."""
    def k(x_ref, o_ref):
        o_ref[...] = pltpu.roll(x_ref[...], 1, 1)
    x = jnp.arange(8 * 128, dtype=jnp.float32).reshape(8, 128)
    out = pl.pallas_call(k, out_shape=jax.ShapeDtypeStruct((8, 128), jnp.float32))(x)
    return bool(out[0, 1] == x[0, 0])   # True -> pltpu.roll(x, s)[p] == x[p - s]


# ----------------------------------------------------------------------------
# stage 1: bilinear upsample (factored warp) + BatchNorm partial sums, grid=(N, pixel tiles)
# ----------------------------------------------------------------------------
def _make_stage1_kernel(C, cdt):
    f32 = jnp.float32

    def kernel(high_ref, low_ref, wxu_ref, wyu_ref, selhh_ref, w1lo_ref, w1hi_ref,
               up_ref, s_ref, ss_ref):
        # column interpolation: (C*hh, ww) @ (ww, PT) -> (C*hh, PT)
        t = jnp.dot(high_ref[...], wxu_ref[...], preferred_element_type=f32)
        # row weights (hh, PT) tiled across channels, then per-channel segment sum on MXU
        wyuf = jnp.concatenate([wyu_ref[...]] * C, axis=0)                    # (C*hh, PT)
        up = jnp.dot(selhh_ref[...], (t * wyuf).astype(cdt),
                     preferred_element_type=f32)                              # (C, PT)
        up_c = up.astype(cdt)
        up_ref[...] = up_c
        # 1x1 conv (both branches fused) only to form the BN batch-statistics partial sums
        y = (jnp.dot(w1lo_ref[...], low_ref[...], preferred_element_type=f32)
             + jnp.dot(w1hi_ref[...], up_c, preferred_element_type=f32))      # (2C, PT)
        s_ref[...] = jnp.sum(y, axis=1, keepdims=True)
        ss_ref[...] = jnp.sum(y * y, axis=1, keepdims=True)

    return kernel


# ----------------------------------------------------------------------------
# stage 2: recompute y, folded BN + ELU, reflection-padded 3x3 conv (rolls), merged deltas
# ----------------------------------------------------------------------------
def _make_stage2_kernel(C, h, w, P, roll_like_jnp, cdt):
    f32 = jnp.float32
    sgn = -1 if roll_like_jnp else 1

    def kernel(low_ref, up_ref, coords_ref, w1lo_ref, w1hi_ref, scale_ref, shift_ref,
               w3m_ref, d_ref):
        co = coords_ref[...]
        rowf = co[0:1, :]
        colf = co[1:2, :]
        col0 = colf == 0.0
        colw = colf == float(w - 1)
        row0 = rowf == 0.0
        rowh = rowf == float(h - 1)

        # recompute y (cheaper than round-tripping it through HBM), fold BN, ELU
        y = (jnp.dot(w1lo_ref[...], low_ref[...], preferred_element_type=f32)
             + jnp.dot(w1hi_ref[...], up_ref[...], preferred_element_type=f32))   # (2C, P)
        z = y * scale_ref[...] + shift_ref[...]
        z = jnp.where(z > 0.0, z, jnp.exp(jnp.minimum(z, 0.0)) - 1.0)

        def shifted(u, s):
            # value at flattened pixel index p + s (wrap-around fixed by border selects)
            return pltpu.roll(u, (sgn * s) % P, 1)

        zxm = shifted(z, -1)
        zxp = shifted(z, 1)
        col_m1 = jnp.where(col0, zxp, zxm)          # x-1, reflected
        col_p1 = jnp.where(colw, zxm, zxp)          # x+1, reflected
        x_mid = jnp.concatenate([col_m1, z, col_p1], axis=0)                      # (6C, P)
        xup = shifted(x_mid, -w)                    # row above
        xdn = shifted(x_mid, w)                     # row below
        x_top = jnp.where(row0, xdn, xup)           # y-1, reflected
        x_bot = jnp.where(rowh, xup, xdn)           # y+1, reflected
        stacked = jnp.concatenate([x_top.astype(cdt), x_mid.astype(cdt),
                                   x_bot.astype(cdt)], axis=0)                    # (9*2C, P)
        d_ref[...] = jnp.dot(w3m_ref[...], stacked, preferred_element_type=f32)   # (4, P)

    return kernel


# ----------------------------------------------------------------------------
# stage 3: two factored bilinear warps (grid_sample) + fuse, grid=(N, pixel tiles)
# ----------------------------------------------------------------------------
def _make_stage3_kernel(C, h, w, cdt):
    f32 = jnp.float32

    def kernel(up3_ref, low3_ref, d_ref, coords_ref, sel_ref, fuse_ref, high_ref):
        co = coords_ref[...]
        rowf = co[0:1, :]                       # (1, PT)
        colf = co[1:2, :]
        PT = co.shape[1]
        colidx = jax.lax.broadcasted_iota(jnp.int32, (w, PT), 0).astype(f32)
        rowidx = jax.lax.broadcasted_iota(jnp.int32, (h, PT), 0).astype(f32)
        d = d_ref[...]                          # (4, PT)

        def warp(src_ref, dx, dy):
            # bilinear, align_corners=True, zeros padding; offsets are in pixels
            sx = colf + dx
            sy = rowf + dy
            x0 = jnp.floor(sx)
            fx = sx - x0
            y0 = jnp.floor(sy)
            fy = sy - y0
            wx = (jnp.where(colidx == x0, 1.0 - fx, 0.0)
                  + jnp.where(colidx == x0 + 1.0, fx, 0.0))                    # (w, PT)
            t = jnp.dot(src_ref[...], wx.astype(cdt),
                        preferred_element_type=f32)                            # (C*h, PT)
            wy = (jnp.where(rowidx == y0, 1.0 - fy, 0.0)
                  + jnp.where(rowidx == y0 + 1.0, fy, 0.0))                    # (h, PT)
            wyf = jnp.concatenate([wy] * C, axis=0)                            # (C*h, PT)
            return jnp.dot(sel_ref[...], (t * wyf).astype(cdt),
                           preferred_element_type=f32)                         # (C, PT)

        gh = warp(up3_ref, d[0:1, :], d[1:2, :])
        gl = warp(low3_ref, d[2:3, :], d[3:4, :])
        fuse_ref[...] = gh + gl
        high_ref[...] = gh

    return kernel


# ----------------------------------------------------------------------------
# wrapper
# ----------------------------------------------------------------------------
def oa_forward(high_stage, low_stage, params, training=True, compute_dtype=jnp.bfloat16):
    """high_stage: (N, C, hh, ww), low_stage: (N, C, h, w), NCHW float32.

    Returns (fuse_high_stage, warped_high_stage, {1: delta1, 2: delta2}) in NCHW, matching
    OA.forward with default flags.  compute_dtype controls the MXU operand dtype
    (accumulation is always f32); training=True uses batch statistics (nn.Module default).
    """
    f32 = jnp.float32
    cdt = compute_dtype
    N, C, hh, ww = high_stage.shape
    Nl, Cl, h, w = low_stage.shape
    assert N == Nl and C == Cl
    P, R = h * w, 2 * C
    PT = _pick_tile(P)
    n_pt = P // PT

    # pure reshapes of NCHW (no transposes): channels/rows on sublanes, pixels on lanes
    high3 = high_stage.reshape(N, C * hh, ww).astype(cdt)
    low2 = low_stage.reshape(N, C, P).astype(cdt)
    low3 = low_stage.reshape(N, C * h, w).astype(cdt)

    wxu, wyu = _upsample_pixel_weights(h, w, hh, ww)
    wxu = wxu.astype(cdt)                                # (ww, P) matmul operand
    wyu = wyu.astype(f32)                                # (hh, P) elementwise weight
    sel_hh = _segment_sum_matrix(C, hh).astype(cdt)      # (C, C*hh)
    sel_h = _segment_sum_matrix(C, h).astype(cdt)        # (C, C*h)
    coords = _pixel_coords(h, w)                         # (2, P) f32
    w1_lo, w1_hi, w3m = _pack_weights(params, C, cdt)

    cp2 = pltpu.CompilerParams(dimension_semantics=("parallel", "parallel"),
                               vmem_limit_bytes=_VMEM_LIMIT)
    cp1 = pltpu.CompilerParams(dimension_semantics=("parallel",),
                               vmem_limit_bytes=_VMEM_LIMIT)

    # ---- stage 1: upsample + BN partial sums ----
    up_f, s_f, ss_f = pl.pallas_call(
        _make_stage1_kernel(C, cdt),
        grid=(N, n_pt),
        in_specs=[
            pl.BlockSpec((None, C * hh, ww), lambda n, t: (n, 0, 0)),
            pl.BlockSpec((None, C, PT), lambda n, t: (n, 0, t)),
            pl.BlockSpec((ww, PT), lambda n, t: (0, t)),
            pl.BlockSpec((hh, PT), lambda n, t: (0, t)),
            pl.BlockSpec((C, C * hh), lambda n, t: (0, 0)),
            pl.BlockSpec((R, C), lambda n, t: (0, 0)),
            pl.BlockSpec((R, C), lambda n, t: (0, 0)),
        ],
        out_specs=(
            pl.BlockSpec((None, C, PT), lambda n, t: (n, 0, t)),
            pl.BlockSpec((None, R, 1), lambda n, t: (n * n_pt + t, 0, 0)),
            pl.BlockSpec((None, R, 1), lambda n, t: (n * n_pt + t, 0, 0)),
        ),
        out_shape=(
            jax.ShapeDtypeStruct((N, C, P), cdt),
            jax.ShapeDtypeStruct((N * n_pt, R, 1), f32),
            jax.ShapeDtypeStruct((N * n_pt, R, 1), f32),
        ),
        compiler_params=cp2,
    )(high3, low2, wxu, wyu, sel_hh, w1_lo, w1_hi)

    # ---- BatchNorm finalize (O(C) values) + affine folding, done with tiny jnp ops ----
    gamma = jnp.concatenate([params["bn1_gamma"], params["bn2_gamma"]]).astype(f32)
    beta = jnp.concatenate([params["bn1_beta"], params["bn2_beta"]]).astype(f32)
    if training:
        cnt = float(N * P)
        mean = jnp.sum(s_f[:, :, 0], axis=0) / cnt
        var = jnp.sum(ss_f[:, :, 0], axis=0) / cnt - mean * mean
        var = jnp.maximum(var, 0.0)
    else:
        mean = jnp.concatenate([params["bn1_running_mean"],
                                params["bn2_running_mean"]]).astype(f32)
        var = jnp.concatenate([params["bn1_running_var"],
                               params["bn2_running_var"]]).astype(f32)
    invstd = jax.lax.rsqrt(var + _EPS)
    scale = (gamma * invstd)[:, None]                 # (2C, 1)
    shift = (beta - mean * gamma * invstd)[:, None]   # (2C, 1)

    # ---- stage 2: deltas (per image; the reflection conv needs the whole image) ----
    d_f = pl.pallas_call(
        _make_stage2_kernel(C, h, w, P, _roll_matches_jnp(), cdt),
        grid=(N,),
        in_specs=[
            pl.BlockSpec((None, C, P), lambda n: (n, 0, 0)),
            pl.BlockSpec((None, C, P), lambda n: (n, 0, 0)),
            pl.BlockSpec((2, P), lambda n: (0, 0)),
            pl.BlockSpec((R, C), lambda n: (0, 0)),
            pl.BlockSpec((R, C), lambda n: (0, 0)),
            pl.BlockSpec((R, 1), lambda n: (0, 0)),
            pl.BlockSpec((R, 1), lambda n: (0, 0)),
            pl.BlockSpec((4, 9 * R), lambda n: (0, 0)),
        ],
        out_specs=pl.BlockSpec((None, 4, P), lambda n: (n, 0, 0)),
        out_shape=jax.ShapeDtypeStruct((N, 4, P), f32),
        compiler_params=cp1,
    )(low2, up_f, coords, w1_lo, w1_hi, scale, shift, w3m)

    # ---- stage 3: grid_sample warps + fuse (pixel-tiled, both axes parallel) ----
    up3 = up_f.reshape(N, C * h, w)                   # free row-major view
    fuse_f, high_f = pl.pallas_call(
        _make_stage3_kernel(C, h, w, cdt),
        grid=(N, n_pt),
        in_specs=[
            pl.BlockSpec((None, C * h, w), lambda n, t: (n, 0, 0)),
            pl.BlockSpec((None, C * h, w), lambda n, t: (n, 0, 0)),
            pl.BlockSpec((None, 4, PT), lambda n, t: (n, 0, t)),
            pl.BlockSpec((2, PT), lambda n, t: (0, t)),
            pl.BlockSpec((C, C * h), lambda n, t: (0, 0)),
        ],
        out_specs=(
            pl.BlockSpec((None, C, PT), lambda n, t: (n, 0, t)),
            pl.BlockSpec((None, C, PT), lambda n, t: (n, 0, t)),
        ),
        out_shape=(
            jax.ShapeDtypeStruct((N, C, P), f32),
            jax.ShapeDtypeStruct((N, C, P), f32),
        ),
        compiler_params=cp2,
    )(up3, low3, d_f, coords, sel_h)

    fuse = fuse_f.reshape(N, C, h, w)
    high_out = high_f.reshape(N, C, h, w)
    deltas = {1: d_f[:, 0:2].reshape(N, 2, h, w), 2: d_f[:, 2:4].reshape(N, 2, h, w)}
    return fuse, high_out, deltas


# ----------------------------------------------------------------------------
# parameters
# ----------------------------------------------------------------------------
def init_oa_params(key, features, generic=False):
    """Parameters matching OA.__init__ shapes (refl_pad=True, bn=True).

    generic=False reproduces the module's initial state (Conv3x3 weights zero, BN affine
    identity); generic=True draws nonzero values everywhere to exercise all code paths.
    """
    C = features
    ks = jax.random.split(key, 8)
    bound = 1.0 / (2.0 * C) ** 0.5

    def conv1(k):
        return jax.random.uniform(k, (C, 2 * C, 1, 1), jnp.float32, -bound, bound)

    def conv3(k):
        if generic:
            return 0.08 * jax.random.normal(k, (2, C, 3, 3), jnp.float32)
        return jnp.zeros((2, C, 3, 3), jnp.float32)   # module zero-initialises these

    def bn(kg, kb):
        if generic:
            return (1.0 + 0.2 * jax.random.normal(kg, (C,), jnp.float32),
                    0.2 * jax.random.normal(kb, (C,), jnp.float32))
        return jnp.ones((C,), jnp.float32), jnp.zeros((C,), jnp.float32)

    g1, b1 = bn(ks[2], ks[3])
    g2, b2 = bn(ks[4], ks[5])
    zeros = jnp.zeros((C,), jnp.float32)
    ones = jnp.ones((C,), jnp.float32)
    return dict(
        conv1_w_1=conv1(ks[0]), conv1_w_2=conv1(ks[1]),
        bn1_gamma=g1, bn1_beta=b1, bn1_running_mean=zeros, bn1_running_var=ones,
        bn2_gamma=g2, bn2_beta=b2, bn2_running_mean=zeros, bn2_running_var=ones,
        conv3_w_1=conv3(ks[6]), conv3_w_2=conv3(ks[7]),
    )


# ----------------------------------------------------------------------------
# pure-JAX reference (validation only)
# ----------------------------------------------------------------------------
def _ref_gridsample(inp, size, delta):
    """Literal transliteration of OA.bilinear_interpolate_torch_gridsample +
    F.grid_sample(bilinear, align_corners=True, padding_mode='zeros')."""
    out_h, out_w = size
    n, c, h, w = inp.shape
    norm_x = (out_w - 1) / 2.0
    norm_y = (out_h - 1) / 2.0
    base_x = jnp.linspace(-1.0, 1.0, out_w)[None, None, :]
    base_y = jnp.linspace(-1.0, 1.0, out_h)[None, :, None]
    gx = base_x + delta[:, 0] / norm_x
    gy = base_y + delta[:, 1] / norm_y
    sx = (gx + 1.0) * 0.5 * (w - 1)
    sy = (gy + 1.0) * 0.5 * (h - 1)
    x0 = jnp.floor(sx)
    y0 = jnp.floor(sy)
    fx = sx - x0
    fy = sy - y0
    flat = inp.reshape(n, c, h * w)
    out = jnp.zeros((n, c, out_h, out_w), inp.dtype)
    for oy, wgt_y in ((0.0, 1.0 - fy), (1.0, fy)):
        for ox, wgt_x in ((0.0, 1.0 - fx), (1.0, fx)):
            xi = x0 + ox
            yi = y0 + oy
            valid = (xi >= 0) & (xi <= w - 1) & (yi >= 0) & (yi <= h - 1)
            xc = jnp.clip(xi, 0, w - 1).astype(jnp.int32)
            yc = jnp.clip(yi, 0, h - 1).astype(jnp.int32)
            idx = jnp.broadcast_to((yc * w + xc).reshape(n, 1, out_h * out_w),
                                   (n, c, out_h * out_w))
            g = jnp.take_along_axis(flat, idx, axis=2).reshape(n, c, out_h, out_w)
            out = out + (wgt_y * wgt_x * valid.astype(inp.dtype))[:, None] * g
    return out


def oa_reference(high_stage, low_stage, params, training=True):
    hp = jax.lax.Precision.HIGHEST
    N, C, hh, ww = high_stage.shape
    _, _, h, w = low_stage.shape
    rrow = _lin_matrix(h, hh)
    rcol = _lin_matrix(w, ww)
    up = jnp.einsum('ia,ncab,jb->ncij', rrow, high_stage, rcol, precision=hp)
    concat = jnp.concatenate([low_stage, up], axis=1)

    def branch(w1, gamma, beta, rmean, rvar, w3):
        y = jnp.einsum('oc,nchw->nohw', w1[:, :, 0, 0], concat, precision=hp)
        if training:
            mean = jnp.mean(y, axis=(0, 2, 3))
            var = jnp.var(y, axis=(0, 2, 3))
        else:
            mean, var = rmean, rvar
        z = ((y - mean[None, :, None, None]) * jax.lax.rsqrt(var + _EPS)[None, :, None, None]
             * gamma[None, :, None, None] + beta[None, :, None, None])
        z = jnp.where(z > 0.0, z, jnp.exp(jnp.minimum(z, 0.0)) - 1.0)
        zp = jnp.pad(z, ((0, 0), (0, 0), (1, 1), (1, 1)), mode='reflect')
        return jax.lax.conv_general_dilated(
            zp, w3, (1, 1), 'VALID',
            dimension_numbers=('NCHW', 'OIHW', 'NCHW'), precision=hp)

    d1 = branch(params["conv1_w_1"], params["bn1_gamma"], params["bn1_beta"],
                params["bn1_running_mean"], params["bn1_running_var"], params["conv3_w_1"])
    d2 = branch(params["conv1_w_2"], params["bn2_gamma"], params["bn2_beta"],
                params["bn2_running_mean"], params["bn2_running_var"], params["conv3_w_2"])
    gh = _ref_gridsample(up, (h, w), d1)
    gl = _ref_gridsample(low_stage, (h, w), d2)
    return gh + gl, gh, {1: d1, 2: d2}


def _max_abs_diff(a, b):
    return float(jnp.max(jnp.abs(a - b)))


if __name__ == "__main__":
    key = jax.random.PRNGKey(0)
    k_hi, k_lo, k_p = jax.random.split(key, 3)

    N, C = 2, 8          # features = 8
    h = w = 16           # low-stage spatial size
    hh = ww = 8          # high-stage spatial size (upsampled to (h, w))

    high_stage = jax.random.normal(k_hi, (N, C, hh, ww), jnp.float32)
    low_stage = jax.random.normal(k_lo, (N, C, h, w), jnp.float32)

    params0 = init_oa_params(k_p, C, generic=False)
    params_g = init_oa_params(jax.random.PRNGKey(1), C, generic=True)

    # 1) strict semantic check: f32 compute path vs the pure-JAX reference (all code paths)
    fuse32, high32, d32 = oa_forward(high_stage, low_stage, params_g,
                                     compute_dtype=jnp.float32)
    jax.block_until_ready((fuse32, high32, d32[1], d32[2]))
    r_fuse, r_high, r_d = oa_reference(high_stage, low_stage, params_g)
    assert _max_abs_diff(d32[1], r_d[1]) < 1e-2
    assert _max_abs_diff(d32[2], r_d[2]) < 1e-2
    assert _max_abs_diff(high32, r_high) < 1e-2
    assert _max_abs_diff(fuse32, r_fuse) < 1e-2

    # 2) default (bf16 MXU) path, module-faithful parameters (Conv3x3 zero-initialised)
    fuse_b, high_b, d_b = oa_forward(high_stage, low_stage, params0)
    jax.block_until_ready((fuse_b, high_b, d_b[1], d_b[2]))
    assert fuse_b.shape == (N, C, h, w) and high_b.shape == (N, C, h, w)
    assert d_b[1].shape == (N, 2, h, w) and d_b[2].shape == (N, 2, h, w)
    assert bool(jnp.all(jnp.isfinite(fuse_b))) and bool(jnp.all(jnp.isfinite(high_b)))
    assert float(jnp.max(jnp.abs(d_b[1]))) < 1e-5     # zero-initialised 3x3 conv -> zero offsets
    assert float(jnp.max(jnp.abs(d_b[2]))) < 1e-5
    r_fuse0, r_high0, _ = oa_reference(high_stage, low_stage, params0)
    assert _max_abs_diff(fuse_b, r_fuse0) < 5e-2
    assert _max_abs_diff(high_b, r_high0) < 5e-2

    # 3) default (bf16 MXU) path, generic parameters: loose sanity vs the f32 reference
    fuse_bg, high_bg, d_bg = oa_forward(high_stage, low_stage, params_g)
    jax.block_until_ready((fuse_bg, high_bg, d_bg[1], d_bg[2]))
    assert _max_abs_diff(d_bg[1], r_d[1]) < 1.5e-1
    assert _max_abs_diff(d_bg[2], r_d[2]) < 1.5e-1
    assert _max_abs_diff(high_bg, r_high) < 1.5e-1
    assert _max_abs_diff(fuse_bg, r_fuse) < 1.5e-1

    print("KERNEL_OK")
</pallas_src>

<mosaic_0001>
module attributes {stable_mosaic.version = 11 : i64} {
  func.func @kernel(%arg0: i32, %arg1: i32, %arg2: memref<1x64x8xf32, #tpu.memory_space<vmem>>, %arg3: memref<1x8x256xf32, #tpu.memory_space<vmem>>, %arg4: memref<8x256xf32, #tpu.memory_space<vmem>>, %arg5: memref<8x256xf32, #tpu.memory_space<vmem>>, %arg6: memref<8x64xf32, #tpu.memory_space<vmem>>, %arg7: memref<16x8xf32, #tpu.memory_space<vmem>>, %arg8: memref<16x8xf32, #tpu.memory_space<vmem>>, %arg9: memref<1x8x256xf32, #tpu.memory_space<vmem>>, %arg10: memref<1x16x1xf32, #tpu.memory_space<vmem>>, %arg11: memref<1x16x1xf32, #tpu.memory_space<vmem>>) attributes {dimension_semantics = [#tpu.dimension_semantics<parallel>, #tpu.dimension_semantics<parallel>], iteration_bounds = array<i64: 2, 1>, scalar_prefetch = 0 : i64, scratch_operands = 0 : i64, tpu.core_type = #tpu.core_type<tc>, window_params = [{transform_indices = @transform_0, window_bounds = array<i64: 1, 64, 8>}, {transform_indices = @transform_1, window_bounds = array<i64: 1, 8, 256>}, {transform_indices = @transform_2, window_bounds = array<i64: 8, 256>}, {transform_indices = @transform_3, window_bounds = array<i64: 8, 256>}, {pipeline_mode = #tpu.pipeline_mode<synchronous>, transform_indices = @transform_4, window_bounds = array<i64: 8, 64>}, {pipeline_mode = #tpu.pipeline_mode<synchronous>, transform_indices = @transform_5, window_bounds = array<i64: 16, 8>}, {pipeline_mode = #tpu.pipeline_mode<synchronous>, transform_indices = @transform_6, window_bounds = array<i64: 16, 8>}, {transform_indices = @transform_7, window_bounds = array<i64: 1, 8, 256>}, {transform_indices = @transform_8, window_bounds = array<i64: 1, 16, 1>}, {transform_indices = @transform_9, window_bounds = array<i64: 1, 16, 1>}]} {
    %c0 = arith.constant 0 : index
    %c0_0 = arith.constant 0 : index
    %c0_1 = arith.constant 0 : index
    %0 = vector.load %arg2[%c0, %c0_0, %c0_1] : memref<1x64x8xf32, #tpu.memory_space<vmem>>, vector<1x64x8xf32>
    %1 = vector.shape_cast %0 : vector<1x64x8xf32> to vector<64x8xf32>
    %c0_2 = arith.constant 0 : index
    %c0_3 = arith.constant 0 : index
    %2 = vector.load %arg4[%c0_2, %c0_3] : memref<8x256xf32, #tpu.memory_space<vmem>>, vector<8x256xf32>
    %cst = arith.constant dense<0.000000e+00> : vector<64x256xf32>
    %3 = tpu.matmul %1, %2, %cst {dimension_numbers = #tpu.dot_dimension_numbers<[1], [0], [0], [1], [0, 0, 1, 1], [], []>} : vector<64x8xf32>, vector<8x256xf32>, vector<64x256xf32> -> vector<64x256xf32>
    %c0_4 = arith.constant 0 : index
    %c0_5 = arith.constant 0 : index
    %4 = vector.load %arg5[%c0_4, %c0_5] : memref<8x256xf32, #tpu.memory_space<vmem>>, vector<8x256xf32>
    %5 = tpu.concatenate %4, %4, %4, %4, %4, %4, %4, %4 in 0 : vector<8x256xf32>, vector<8x256xf32>, vector<8x256xf32>, vector<8x256xf32>, vector<8x256xf32>, vector<8x256xf32>, vector<8x256xf32>, vector<8x256xf32> -> vector<64x256xf32>
    %c0_6 = arith.constant 0 : index
    %c0_7 = arith.constant 0 : index
    %6 = vector.load %arg6[%c0_6, %c0_7] : memref<8x64xf32, #tpu.memory_space<vmem>>, vector<8x64xf32>
    %7 = arith.mulf %3, %5 : vector<64x256xf32>
    %cst_8 = arith.constant dense<0.000000e+00> : vector<8x256xf32>
    %8 = tpu.matmul %6, %7, %cst_8 {dimension_numbers = #tpu.dot_dimension_numbers<[1], [0], [0], [1], [0, 0, 1, 1], [], []>} : vector<8x64xf32>, vector<64x256xf32>, vector<8x256xf32> -> vector<8x256xf32>
    %c0_9 = arith.constant 0 : index
    %c0_10 = arith.constant 0 : index
    %c0_11 = arith.constant 0 : index
    %9 = vector.load %arg9[%c0_9, %c0_10, %c0_11] : memref<1x8x256xf32, #tpu.memory_space<vmem>>, vector<1x8x256xf32>
    %10 = vector.shape_cast %9 : vector<1x8x256xf32> to vector<8x256xf32>
    %11 = vector.shape_cast %8 : vector<8x256xf32> to vector<1x8x256xf32>
    tpu.vector_store %arg9[%c0_9, %c0_10, %c0_11], %11 {strides = array<i32>} : memref<1x8x256xf32, #tpu.memory_space<vmem>>, vector<1x8x256xf32>,
    %c0_12 = arith.constant 0 : index
    %c0_13 = arith.constant 0 : index
    %12 = vector.load %arg7[%c0_12, %c0_13] : memref<16x8xf32, #tpu.memory_space<vmem>>, vector<16x8xf32>
    %c0_14 = arith.constant 0 : index
    %c0_15 = arith.constant 0 : index
    %c0_16 = arith.constant 0 : index
    %13 = vector.load %arg3[%c0_14, %c0_15, %c0_16] : memref<1x8x256xf32, #tpu.memory_space<vmem>>, vector<1x8x256xf32>
    %14 = vector.shape_cast %13 : vector<1x8x256xf32> to vector<8x256xf32>
    %cst_17 = arith.constant dense<0.000000e+00> : vector<16x256xf32>
    %15 = tpu.matmul %12, %14, %cst_17 {dimension_numbers = #tpu.dot_dimension_numbers<[1], [0], [0], [1], [0, 0, 1, 1], [], []>} : vector<16x8xf32>, vector<8x256xf32>, vector<16x256xf32> -> vector<16x256xf32>
    %c0_18 = arith.constant 0 : index
    %c0_19 = arith.constant 0 : index
    %16 = vector.load %arg8[%c0_18, %c0_19] : memref<16x8xf32, #tpu.memory_space<vmem>>, vector<16x8xf32>
    %cst_20 = arith.constant dense<0.000000e+00> : vector<16x256xf32>
    %17 = tpu.matmul %16, %8, %cst_20 {dimension_numbers = #tpu.dot_dimension_numbers<[1], [0], [0], [1], [0, 0, 1, 1], [], []>} : vector<16x8xf32>, vector<8x256xf32>, vector<16x256xf32> -> vector<16x256xf32>
    %18 = arith.addf %15, %17 : vector<16x256xf32>
    %cst_21 = arith.constant dense<0.000000e+00> : vector<16xf32>
    %19 = vector.multi_reduction <add>, %18, %cst_21 [1] : vector<16x256xf32> to vector<16xf32>
    %20 = vector.shape_cast %19 : vector<16xf32> to vector<16x1xf32>
    %c0_22 = arith.constant 0 : index
    %c0_23 = arith.constant 0 : index
    %c0_24 = arith.constant 0 : index
    %21 = vector.load %arg10[%c0_22, %c0_23, %c0_24] : memref<1x16x1xf32, #tpu.memory_space<vmem>>, vector<1x16x1xf32>
    %22 = vector.shape_cast %21 : vector<1x16x1xf32> to vector<16x1xf32>
    %23 = vector.shape_cast %20 : vector<16x1xf32> to vector<1x16x1xf32>
    tpu.vector_store %arg10[%c0_22, %c0_23, %c0_24], %23 {strides = array<i32>} : memref<1x16x1xf32, #tpu.memory_space<vmem>>, vector<1x16x1xf32>,
    %24 = arith.mulf %18, %18 : vector<16x256xf32>
    %cst_25 = arith.constant dense<0.000000e+00> : vector<16xf32>
    %25 = vector.multi_reduction <add>, %24, %cst_25 [1] : vector<16x256xf32> to vector<16xf32>
    %26 = vector.shape_cast %25 : vector<16xf32> to vector<16x1xf32>
    %c0_26 = arith.constant 0 : index
    %c0_27 = arith.constant 0 : index
    %c0_28 = arith.constant 0 : index
    %27 = vector.load %arg11[%c0_26, %c0_27, %c0_28] : memref<1x16x1xf32, #tpu.memory_space<vmem>>, vector<1x16x1xf32>
    %28 = vector.shape_cast %27 : vector<1x16x1xf32> to vector<16x1xf32>
    %29 = vector.shape_cast %26 : vector<16x1xf32> to vector<1x16x1xf32>
    tpu.vector_store %arg11[%c0_26, %c0_27, %c0_28], %29 {strides = array<i32>} : memref<1x16x1xf32, #tpu.memory_space<vmem>>, vector<1x16x1xf32>,
    return
  }
  func.func @transform_0(%arg0: i32, %arg1: i32) -> (i32, i32, i32) {
    %c0_i32 = arith.constant 0 : i32
    %c0_i32_0 = arith.constant 0 : i32
    %c0_i32_1 = arith.constant 0 : i32
    return %arg0, %c0_i32, %c0_i32_0 : i32, i32, i32
  }
  func.func @transform_1(%arg0: i32, %arg1: i32) -> (i32, i32, i32) {
    %c0_i32 = arith.constant 0 : i32
    %c0_i32_0 = arith.constant 0 : i32
    return %arg0, %c0_i32, %arg1 : i32, i32, i32
  }
  func.func @transform_2(%arg0: i32, %arg1: i32) -> (i32, i32) {
    %c0_i32 = arith.constant 0 : i32
    %c0_i32_0 = arith.constant 0 : i32
    return %c0_i32, %arg1 : i32, i32
  }
  func.func @transform_3(%arg0: i32, %arg1: i32) -> (i32, i32) {
    %c0_i32 = arith.constant 0 : i32
    %c0_i32_0 = arith.constant 0 : i32
    return %c0_i32, %arg1 : i32, i32
  }
  func.func @transform_4(%arg0: i32, %arg1: i32) -> (i32, i32) {
    %c0_i32 = arith.constant 0 : i32
    %c0_i32_0 = arith.constant 0 : i32
    %c0_i32_1 = arith.constant 0 : i32
    return %c0_i32, %c0_i32_0 : i32, i32
  }
  func.func @transform_5(%arg0: i32, %arg1: i32) -> (i32, i32) {
    %c0_i32 = arith.constant 0 : i32
    %c0_i32_0 = arith.constant 0 : i32
    %c0_i32_1 = arith.constant 0 : i32
    return %c0_i32, %c0_i32_0 : i32, i32
  }
  func.func @transform_6(%arg0: i32, %arg1: i32) -> (i32, i32) {
    %c0_i32 = arith.constant 0 : i32
    %c0_i32_0 = arith.constant 0 : i32
    %c0_i32_1 = arith.constant 0 : i32
    return %c0_i32, %c0_i32_0 : i32, i32
  }
  func.func @transform_7(%arg0: i32, %arg1: i32) -> (i32, i32, i32) {
    %c0_i32 = arith.constant 0 : i32
    %c0_i32_0 = arith.constant 0 : i32
    return %arg0, %c0_i32, %arg1 : i32, i32, i32
  }
  func.func @transform_8(%arg0: i32, %arg1: i32) -> (i32, i32, i32) {
    %c1_i32 = arith.constant 1 : i32
    %0 = arith.muli %arg0, %c1_i32 : i32
    %1 = arith.addi %0, %arg1 : i32
    %c0_i32 = arith.constant 0 : i32
    %c0_i32_0 = arith.constant 0 : i32
    %c0_i32_1 = arith.constant 0 : i32
    return %1, %c0_i32, %c0_i32_0 : i32, i32, i32
  }
  func.func @transform_9(%arg0: i32, %arg1: i32) -> (i32, i32, i32) {
    %c1_i32 = arith.constant 1 : i32
    %0 = arith.muli %arg0, %c1_i32 : i32
    %1 = arith.addi %0, %arg1 : i32
    %c0_i32 = arith.constant 0 : i32
    %c0_i32_0 = arith.constant 0 : i32
    %c0_i32_1 = arith.constant 0 : i32
    return %1, %c0_i32, %c0_i32_0 : i32, i32, i32
  }
}

</mosaic_0001>

<llo_original>
// kernel: tpu_custom_call.1
$region0: #{tpu_custom_call.1}
  #allocation0 [shape = 'u32[]', space=smem, size = 0x4, offset = 0x4, fixed_abs, tag = 'smem constant byte address 0x4 - core index']
  #allocation1 [shape = 'u32[72,128]{1,0:T(1,128)}', space=vmem, size = 0x9000, scoped, tag = 'internal scratch']
  %s0 = inlined_call_operand.vmem [shape: f32[2,64,8], index: 0, kind: input, shape index: {}]
  %s1 = inlined_call_operand.vmem [shape: f32[2,8,256], index: 1, kind: input, shape index: {}]
  %s2 = inlined_call_operand.vmem [shape: f32[8,256], index: 2, kind: input, shape index: {}]
  %s3 = inlined_call_operand.vmem [shape: f32[8,256], index: 3, kind: input, shape index: {}]
  %s4 = inlined_call_operand.vmem [shape: f32[8,64], index: 4, kind: input, shape index: {}]
  %s5 = inlined_call_operand.vmem [shape: f32[16,8], index: 5, kind: input, shape index: {}]
  %s6 = inlined_call_operand.vmem [shape: f32[16,8], index: 6, kind: input, shape index: {}]
  %s7 = inlined_call_operand.hbm [shape: f32[2,8,256], index: 7, kind: output, shape index: {0}]
  %s8 = inlined_call_operand.vmem [shape: f32[2,16,1], index: 8, kind: output, shape index: {1}]
  %s9 = inlined_call_operand.vmem [shape: f32[2,16,1], index: 9, kind: output, shape index: {2}]
  %10 = xla_tuple %s7, %s8, %s9
  %s11 = sld [smem:[#allocation0]]
  $region77: #{tpu_custom_call.1} parent=0
    _
  %s13 = ssub.s32 1, %s11
  %s14 = scalar_select 0, %s13, %s11
  $region1: #{tpu_custom_call.1} parent=0
    #allocation2 [shape = 'u8[16384]{0}', space=vmem, size = 0x4000, scoped, tag = 'output window, operand 0']
    #allocation3 [shape = 's32[2]{0}', space=sflag, size = 0x8, scoped, tag = 'scoped memory for tpu_custom_call.1']
    %15 = vsyncpa [#allocation3], 0
    %s16 = scalar_lea.sflag [#allocation3], 1
    %17 = vsyncpa %s16, 0
    loop: start=0, step=1, limit=4
    $region2: #{tpu_custom_call.1} parent=1 // loop_pre_header
      _
    $region3: #{tpu_custom_call.1} parent=1 // loop_header
      %s19 = sphi 0, %s23
      %p20 = scmp.ge.s32.totalorder %s19, 4
      %s26 = sphi 0, %s38
      %s27 = sphi 0, %s34
      %s28 = sphi 0, %s26
      %s29 = sphi 0, %s27
      %s30 = sphi 0, %s28
      %s31 = sphi 0, %s29
      %s41 = sphi 0, %s43
      %s44 = sphi 0, %s41
      %s45 = sphi 0, %s44
      %s61 = sphi 0, %s45
      %s69 = sphi 0, %s71
      %s72 = sphi 0, %s69
      %s73 = sphi 0, %s72
      %s89 = sphi 0, %s73
      %s95 = sphi 0, %s97
      %s98 = sphi 0, %s95
      %s99 = sphi 0, %s98
      %s115 = sphi 0, %s99
      %s121 = sphi 0, %s123
      %s124 = sphi 0, %s121
      %s125 = sphi 0, %s124
      %s141 = sphi 0, %s125
      %s145 = sphi 0, %s145
      %s147 = sphi 0, %s145
      %s148 = sphi 0, %s147
      %s162 = sphi 0, %s148
      %s166 = sphi 0, %s166
      %s168 = sphi 0, %s166
      %s169 = sphi 0, %s168
      %s183 = sphi 0, %s169
      %s187 = sphi 0, %s187
      %s189 = sphi 0, %s187
      %s190 = sphi 0, %s189
      %s204 = sphi 0, %s190
      %s212 = sphi 0, %s214
      %s215 = sphi 0, %s212
      %s216 = sphi 0, %s215
      %s232 = sphi 0, %s216
      %s240 = sphi 0, %s242
      %s243 = sphi 0, %s240
      %s244 = sphi 0, %s243
      %s260 = sphi 0, %s244
      %s268 = sphi 0, %s270
      %s271 = sphi 0, %s268
      %s272 = sphi 0, %s271
      %s288 = sphi 0, %s272
    $region4: #{tpu_custom_call.1} parent=1 // loop_header_branch
      %22 = sbr.rel (%p20) target = $region8
    $region5: #{tpu_custom_call.1} parent=1 // loop_body
      %s24 = ssub.s32 %s19, 1
      %s25 = ssub.s32 %s19, 2
      %s32 = sadd.s32 1, %s27
      %p33 = scmp.ge.s32.totalorder %s32, 1
      %s34 = scalar_select %p33, 0, %s32
      %s35 = sadd.s32 1, %s26
      %s36 = scalar_select %p33, %s35, %s26
      %p37 = scmp.ge.s32.totalorder %s36, 2
      %s38 = scalar_select %p37, 0, %s36
      %s39 = ssub.s32 %s26, %s38
      %p40 = scmp.eq.s32.totalorder %s39, 0
      %s42 = sadd.s32 %s41, 1
      %s43 = scalar_select %p40, %s41, %s42
      %p46 = pneg %p40
      %p47 = scmp.eq.s32.totalorder %s19, 1
      %p48 = por %p46, %p47
      %p49 = scmp.ne.s32.totalorder %s41, %s44
      %p50 = scmp.eq.s32.totalorder %s19, 0
      %p51 = por %p49, %p50
      %p52 = scmp.ne.s32.totalorder %s41, %s44
      %p53 = scmp.eq.s32.totalorder %s24, 1
      %p54 = por %p52, %p53
      %p55 = scmp.ne.s32.totalorder %s44, %s45
      %p56 = scmp.eq.s32.totalorder %s24, 0
      %p57 = por %p55, %p56
      %p58 = scmp.ne.s32.totalorder %s44, %s45
      %p59 = scmp.eq.s32.totalorder %s25, 1
      %p60 = por %p58, %p59
      %p62 = scmp.ne.s32.totalorder %s45, %s61
      %p63 = scmp.eq.s32.totalorder %s25, 0
      %p64 = por %p62, %p63
      %s65 = ssub.s32 %s26, %s38
      %s66 = ssub.s32 %s27, %s34
      %s67 = sor.u32 %s65, %s66
      %p68 = scmp.eq.s32.totalorder %s67, 0
      %s70 = sadd.s32 %s69, 1
      %s71 = scalar_select %p68, %s69, %s70
      %p74 = pneg %p68
      %p75 = scmp.eq.s32.totalorder %s19, 1
      %p76 = por %p74, %p75
      %p77 = scmp.ne.s32.totalorder %s69, %s72
      %p78 = scmp.eq.s32.totalorder %s19, 0
      %p79 = por %p77, %p78
      %p80 = scmp.ne.s32.totalorder %s69, %s72
      %p81 = scmp.eq.s32.totalorder %s24, 1
      %p82 = por %p80, %p81
      %p83 = scmp.ne.s32.totalorder %s72, %s73
      %p84 = scmp.eq.s32.totalorder %s24, 0
      %p85 = por %p83, %p84
      %p86 = scmp.ne.s32.totalorder %s72, %s73
      %p87 = scmp.eq.s32.totalorder %s25, 1
      %p88 = por %p86, %p87
      %p90 = scmp.ne.s32.totalorder %s73, %s89
      %p91 = scmp.eq.s32.totalorder %s25, 0
      %p92 = por %p90, %p91
      %s93 = ssub.s32 %s27, %s34
      %p94 = scmp.eq.s32.totalorder %s93, 0
      %s96 = sadd.s32 %s95, 1
      %s97 = scalar_select %p94, %s95, %s96
      %p100 = pneg %p94
      %p101 = scmp.eq.s32.totalorder %s19, 1
      %p102 = por %p100, %p101
      %p103 = scmp.ne.s32.totalorder %s95, %s98
      %p104 = scmp.eq.s32.totalorder %s19, 0
      %p105 = por %p103, %p104
      %p106 = scmp.ne.s32.totalorder %s95, %s98
      %p107 = scmp.eq.s32.totalorder %s24, 1
      %p108 = por %p106, %p107
      %p109 = scmp.ne.s32.totalorder %s98, %s99
      %p110 = scmp.eq.s32.totalorder %s24, 0
      %p111 = por %p109, %p110
      %p112 = scmp.ne.s32.totalorder %s98, %s99
      %p113 = scmp.eq.s32.totalorder %s25, 1
      %p114 = por %p112, %p113
      %p116 = scmp.ne.s32.totalorder %s99, %s115
      %p117 = scmp.eq.s32.totalorder %s25, 0
      %p118 = por %p116, %p117
      %s119 = ssub.s32 %s27, %s34
      %p120 = scmp.eq.s32.totalorder %s119, 0
      %s122 = sadd.s32 %s121, 1
      %s123 = scalar_select %p120, %s121, %s122
      %p126 = pneg %p120
      %p127 = scmp.eq.s32.totalorder %s19, 1
      %p128 = por %p126, %p127
      %p129 = scmp.ne.s32.totalorder %s121, %s124
      %p130 = scmp.eq.s32.totalorder %s19, 0
      %p131 = por %p129, %p130
      %p132 = scmp.ne.s32.totalorder %s121, %s124
      %p133 = scmp.eq.s32.totalorder %s24, 1
      %p134 = por %p132, %p133
      %p135 = scmp.ne.s32.totalorder %s124, %s125
      %p136 = scmp.eq.s32.totalorder %s24, 0
      %p137 = por %p135, %p136
      %p138 = scmp.ne.s32.totalorder %s124, %s125
      %p139 = scmp.eq.s32.totalorder %s25, 1
      %p140 = por %p138, %p139
      %p142 = scmp.ne.s32.totalorder %s125, %s141
      %p143 = scmp.eq.s32.totalorder %s25, 0
      %p144 = por %p142, %p143
      %s146 = sadd.s32 %s145, 1
      %p149 = scmp.eq.s32.totalorder %s19, 1
      %p150 = scmp.ne.s32.totalorder %s145, %s147
      %p151 = scmp.eq.s32.totalorder %s19, 0
      %p152 = por %p150, %p151
      %p153 = scmp.ne.s32.totalorder %s145, %s147
      %p154 = scmp.eq.s32.totalorder %s24, 1
      %p155 = por %p153, %p154
      %p156 = scmp.ne.s32.totalorder %s147, %s148
      %p157 = scmp.eq.s32.totalorder %s24, 0
      %p158 = por %p156, %p157
      %p159 = scmp.ne.s32.totalorder %s147, %s148
      %p160 = scmp.eq.s32.totalorder %s25, 1
      %p161 = por %p159, %p160
      %p163 = scmp.ne.s32.totalorder %s148, %s162
      %p164 = scmp.eq.s32.totalorder %s25, 0
      %p165 = por %p163, %p164
      %s167 = sadd.s32 %s166, 1
      %p170 = scmp.eq.s32.totalorder %s19, 1
      %p171 = scmp.ne.s32.totalorder %s166, %s168
      %p172 = scmp.eq.s32.totalorder %s19, 0
      %p173 = por %p171, %p172
      %p174 = scmp.ne.s32.totalorder %s166, %s168
      %p175 = scmp.eq.s32.totalorder %s24, 1
      %p176 = por %p174, %p175
      %p177 = scmp.ne.s32.totalorder %s168, %s169
      %p178 = scmp.eq.s32.totalorder %s24, 0
      %p179 = por %p177, %p178
      %p180 = scmp.ne.s32.totalorder %s168, %s169
      %p181 = scmp.eq.s32.totalorder %s25, 1
      %p182 = por %p180, %p181
      %p184 = scmp.ne.s32.totalorder %s169, %s183
      %p185 = scmp.eq.s32.totalorder %s25, 0
      %p186 = por %p184, %p185
      %s188 = sadd.s32 %s187, 1
      %p191 = scmp.eq.s32.totalorder %s19, 1
      %p192 = scmp.ne.s32.totalorder %s187, %s189
      %p193 = scmp.eq.s32.totalorder %s19, 0
      %p194 = por %p192, %p193
      %p195 = scmp.ne.s32.totalorder %s187, %s189
      %p196 = scmp.eq.s32.totalorder %s24, 1
      %p197 = por %p195, %p196
      %p198 = scmp.ne.s32.totalorder %s189, %s190
      %p199 = scmp.eq.s32.totalorder %s24, 0
      %p200 = por %p198, %p199
      %p201 = scmp.ne.s32.totalorder %s189, %s190
      %p202 = scmp.eq.s32.totalorder %s25, 1
      %p203 = por %p201, %p202
      %p205 = scmp.ne.s32.totalorder %s190, %s204
      %p206 = scmp.eq.s32.totalorder %s25, 0
      %p207 = por %p205, %p206
      %s208 = ssub.s32 %s26, %s38
      %s209 = ssub.s32 %s27, %s34
      %s210 = sor.u32 %s208, %s209
      %p211 = scmp.eq.s32.totalorder %s210, 0
      %s213 = sadd.s32 %s212, 1
      %s214 = scalar_select %p211, %s212, %s213
      %p217 = pneg %p211
      %p218 = scmp.eq.s32.totalorder %s19, 1
      %p219 = por %p217, %p218
      %p220 = scmp.ne.s32.totalorder %s212, %s215
      %p221 = scmp.eq.s32.totalorder %s19, 0
      %p222 = por %p220, %p221
      %p223 = scmp.ne.s32.totalorder %s212, %s215
      %p224 = scmp.eq.s32.totalorder %s24, 1
      %p225 = por %p223, %p224
      %p226 = scmp.ne.s32.totalorder %s215, %s216
      %p227 = scmp.eq.s32.totalorder %s24, 0
      %p228 = por %p226, %p227
      %p229 = scmp.ne.s32.totalorder %s215, %s216
      %p230 = scmp.eq.s32.totalorder %s25, 1
      %p231 = por %p229, %p230
      %p233 = scmp.ne.s32.totalorder %s216, %s232
      %p234 = scmp.eq.s32.totalorder %s25, 0
      %p235 = por %p233, %p234
      %s236 = sadd.s32 %s26, %s27
      %s237 = sadd.s32 %s38, %s34
      %s238 = ssub.s32 %s236, %s237
      %p239 = scmp.eq.s32.totalorder %s238, 0
      %s241 = sadd.s32 %s240, 1
      %s242 = scalar_select %p239, %s240, %s241
      %p245 = pneg %p239
      %p246 = scmp.eq.s32.totalorder %s19, 1
      %p247 = por %p245, %p246
      %p248 = scmp.ne.s32.totalorder %s240, %s243
      %p249 = scmp.eq.s32.totalorder %s19, 0
      %p250 = por %p248, %p249
      %p251 = scmp.ne.s32.totalorder %s240, %s243
      %p252 = scmp.eq.s32.totalorder %s24, 1
      %p253 = por %p251, %p252
      %p254 = scmp.ne.s32.totalorder %s243, %s244
      %p255 = scmp.eq.s32.totalorder %s24, 0
      %p256 = por %p254, %p255
      %p257 = scmp.ne.s32.totalorder %s243, %s244
      %p258 = scmp.eq.s32.totalorder %s25, 1
      %p259 = por %p257, %p258
      %p261 = scmp.ne.s32.totalorder %s244, %s260
      %p262 = scmp.eq.s32.totalorder %s25, 0
      %p263 = por %p261, %p262
      %s264 = sadd.s32 %s26, %s27
      %s265 = sadd.s32 %s38, %s34
      %s266 = ssub.s32 %s264, %s265
      %p267 = scmp.eq.s32.totalorder %s266, 0
      %s269 = sadd.s32 %s268, 1
      %s270 = scalar_select %p267, %s268, %s269
      %p273 = pneg %p267
      %p274 = scmp.eq.s32.totalorder %s19, 1
      %p275 = por %p273, %p274
      %p276 = scmp.ne.s32.totalorder %s268, %s271
      %p277 = scmp.eq.s32.totalorder %s19, 0
      %p278 = por %p276, %p277
      %p279 = scmp.ne.s32.totalorder %s268, %s271
      %p280 = scmp.eq.s32.totalorder %s24, 1
      %p281 = por %p279, %p280
      %p282 = scmp.ne.s32.totalorder %s271, %s272
      %p283 = scmp.eq.s32.totalorder %s24, 0
      %p284 = por %p282, %p283
      %p285 = scmp.ne.s32.totalorder %s271, %s272
      %p286 = scmp.eq.s32.totalorder %s25, 1
      %p287 = por %p285, %p286
      %p289 = scmp.ne.s32.totalorder %s272, %s288
      %p290 = scmp.eq.s32.totalorder %s25, 0
      %p291 = por %p289, %p290
      %p292 = scmp.le.s32.totalorder 1, %s19
      %p293 = scmp.lt.s32.totalorder %s19, 3
      %p294 = pnand %p292, %p293
      %p295 = pneg %p294
      // Predicated region
      $region9: #{tpu_custom_call.1} parent=5 // pred_check
        _
      $region10: #{tpu_custom_call.1} parent=5 // pred_check_branch
        %297 = sbr.rel (%p294) target = $region12
      $region11: #{tpu_custom_call.1} parent=5 // pred_region
        %s298 = ssub.s32 %s19, 1
        // Predicated region
        $region13: #{tpu_custom_call.1} parent=11 // pred_check
          %p299 = pneg %p111
        $region14: #{tpu_custom_call.1} parent=11 // pred_check_branch
          %301 = sbr.rel (%p299) target = $region16
        $region15: #{tpu_custom_call.1} parent=11 // pred_region
          %s302 = smul.u32 2, %s29
          %p303 = scmp.lt.s32.totalorder %s302, 1
          %s304 = scalar_select %p303, %s302, 1
          %s305 = smul.addr %s304, 8
          %s306 = scalar_lea.vmem %s2, %s305
          %s307 = smul.u32 2, %s29
        $region16: #{tpu_custom_call.1} parent=11 // pred_fallthru
          _
        // Predicated region
        $region17: #{tpu_custom_call.1} parent=11 // pred_check
          %p308 = pneg %p137
        $region18: #{tpu_custom_call.1} parent=11 // pred_check_branch
          %310 = sbr.rel (%p308) target = $region20
        $region19: #{tpu_custom_call.1} parent=11 // pred_region
          %s311 = smul.u32 2, %s29
          %p312 = scmp.lt.s32.totalorder %s311, 1
          %s313 = scalar_select %p312, %s311, 1
          %s314 = smul.addr %s313, 8
          %s315 = scalar_lea.vmem %s3, %s314
          %s316 = smul.u32 2, %s29
        $region20: #{tpu_custom_call.1} parent=11 // pred_fallthru
          _
        // Predicated region
        $region21: #{tpu_custom_call.1} parent=11 // pred_check
          %p317 = pneg %p158
        $region22: #{tpu_custom_call.1} parent=11 // pred_check_branch
          %319 = sbr.rel (%p317) target = $region24
        $region23: #{tpu_custom_call.1} parent=11 // pred_region
          _
        $region24: #{tpu_custom_call.1} parent=11 // pred_fallthru
          _
        // Predicated region
        $region25: #{tpu_custom_call.1} parent=11 // pred_check
          %p320 = pneg %p179
        $region26: #{tpu_custom_call.1} parent=11 // pred_check_branch
          %322 = sbr.rel (%p320) target = $region28
        $region27: #{tpu_custom_call.1} parent=11 // pred_region
          _
        $region28: #{tpu_custom_call.1} parent=11 // pred_fallthru
          _
        // Predicated region
        $region29: #{tpu_custom_call.1} parent=11 // pred_check
          %p323 = pneg %p200
        $region30: #{tpu_custom_call.1} parent=11 // pred_check_branch
          %325 = sbr.rel (%p323) target = $region32
        $region31: #{tpu_custom_call.1} parent=11 // pred_region
          _
        $region32: #{tpu_custom_call.1} parent=11 // pred_fallthru
          _
      $region12: #{tpu_custom_call.1} parent=5 // pred_fallthru
        _
      %p326 = scmp.lt.s32.totalorder %s19, 2
      // Predicated region
      $region33: #{tpu_custom_call.1} parent=5 // pred_check
        %p327 = pneg %p326
      $region34: #{tpu_custom_call.1} parent=5 // pred_check_branch
        %329 = sbr.rel (%p327) target = $region36
      $region35: #{tpu_custom_call.1} parent=5 // pred_region
        // Predicated region
        $region37: #{tpu_custom_call.1} parent=35 // pred_check
          %p330 = pneg %p51
        $region38: #{tpu_custom_call.1} parent=35 // pred_check_branch
          %332 = sbr.rel (%p330) target = $region40
        $region39: #{tpu_custom_call.1} parent=35 // pred_region
          %p333 = scmp.lt.s32.totalorder %s26, 1
          %s334 = scalar_select %p333, %s26, 1
          %s335 = smul.addr %s334, 8
          %s336 = smul.addr %s335, 8
          %s337 = scalar_lea.vmem %s0, %s336
        $region40: #{tpu_custom_call.1} parent=35 // pred_fallthru
          _
        // Predicated region
        $region41: #{tpu_custom_call.1} parent=35 // pred_check
          %p338 = pneg %p79
        $region42: #{tpu_custom_call.1} parent=35 // pred_check_branch
          %340 = sbr.rel (%p338) target = $region44
        $region43: #{tpu_custom_call.1} parent=35 // pred_region
          %s341 = smul.u32 2, %s27
          %p342 = scmp.lt.s32.totalorder %s26, 1
          %s343 = scalar_select %p342, %s26, 1
          %p344 = scmp.lt.s32.totalorder %s341, 1
          %s345 = scalar_select %p344, %s341, 1
          %s346 = smul.addr %s343, 2
          %s347 = sadd.s32 %s345, %s346
          %s348 = smul.addr %s347, 8
          %s349 = scalar_lea.vmem %s1, %s348
          %s350 = smul.u32 2, %s27
        $region44: #{tpu_custom_call.1} parent=35 // pred_fallthru
          _
      $region36: #{tpu_custom_call.1} parent=5 // pred_fallthru
        _
      %p351 = scmp.le.s32.totalorder 1, %s19
      %p352 = scmp.lt.s32.totalorder %s19, 3
      %p353 = pnand %p351, %p352
      %p354 = pneg %p353
      // Predicated region
      $region45: #{tpu_custom_call.1} parent=5 // pred_check
        _
      $region46: #{tpu_custom_call.1} parent=5 // pred_check_branch
        %356 = sbr.rel (%p353) target = $region48
      $region47: #{tpu_custom_call.1} parent=5 // pred_region
        %s357 = ssub.s32 %s19, 1
        %p358 = scmp.lt.s32.totalorder %s28, 1
        %s359 = scalar_select %p358, %s28, 1
        %s360 = smul.addr %s359, 8
        %s361 = smul.addr %s360, 8
        %s362 = scalar_lea.vmem %s0, %s361
        %p363 = pneg %p57
        %p364 = pneg %p54
        %s365 = smul.u32 2, %s29
        %p366 = scmp.lt.s32.totalorder %s28, 1
        %s367 = scalar_select %p366, %s28, 1
        %p368 = scmp.lt.s32.totalorder %s365, 1
        %s369 = scalar_select %p368, %s365, 1
        %s370 = smul.addr %s367, 2
        %s371 = sadd.s32 %s369, %s370
        %s372 = smul.addr %s371, 8
        %s373 = scalar_lea.vmem %s1, %s372
        %p374 = pneg %p85
        %p375 = pneg %p82
        %s376 = smul.u32 2, %s29
        %p377 = scmp.lt.s32.totalorder %s376, 1
        %s378 = scalar_select %p377, %s376, 1
        %s379 = smul.addr %s378, 8
        %s380 = scalar_lea.vmem %s2, %s379
        %p381 = pneg %p111
        %p382 = pneg %p108
        %s383 = smul.u32 2, %s29
        %p384 = scmp.lt.s32.totalorder %s383, 1
        %s385 = scalar_select %p384, %s383, 1
        %s386 = smul.addr %s385, 8
        %s387 = scalar_lea.vmem %s3, %s386
        %p388 = pneg %p137
        %p389 = pneg %p134
        %p390 = pneg %p158
        %p391 = pneg %p155
        %p392 = pneg %p179
        %p393 = pneg %p176
        %p394 = pneg %p200
        %p395 = pneg %p197
        %p396 = pneg %p228
        %p397 = pneg %p225
        %s398 = sand.u32 %s215, 1
        %s399 = scalar_lea.sflag [#allocation3], %s398
        %s400 = sand.u32 %s215, 1
        %s401 = smul.addr %s400, 16
        %s402 = scalar_lea.vmem [#allocation2], %s401
        %p403 = pneg %p256
        %p404 = pneg %p253
        %s405 = sadd.s32 %s28, %s29
        %p406 = scmp.lt.s32.totalorder %s405, 1
        %s407 = scalar_select %p406, %s405, 1
        %s408 = smul.addr %s407, 2
        %s409 = smul.addr %s408, 8
        %s410 = scalar_lea.vmem %s8, %s409
        %p411 = pneg %p284
        %p412 = pneg %p281
        %s413 = sadd.s32 %s28, %s29
        %p414 = scmp.lt.s32.totalorder %s413, 1
        %s415 = scalar_select %p414, %s413, 1
        %s416 = smul.addr %s415, 2
        %s417 = smul.addr %s416, 8
        %s418 = scalar_lea.vmem %s9, %s417
        %p419 = scmp.lt.s32.totalorder %s28, 1
        %s420 = scalar_select %p419, %s28, 1
        %s421 = smul.addr %s420, 8
        %s422 = smul.addr %s421, 8
        %s423 = scalar_lea.vmem %s0, %s422
        %s424 = smul.u32 2, %s29
        %p425 = scmp.lt.s32.totalorder %s28, 1
        %s426 = scalar_select %p425, %s28, 1
        %p427 = scmp.lt.s32.totalorder %s424, 1
        %s428 = scalar_select %p427, %s424, 1
        %s429 = smul.addr %s426, 2
        %s430 = sadd.s32 %s428, %s429
        %s431 = smul.addr %s430, 8
        %s432 = scalar_lea.vmem %s1, %s431
        %s433 = smul.u32 2, %s29
        %s434 = smul.u32 2, %s29
        %p435 = scmp.lt.s32.totalorder %s434, 1
        %s436 = scalar_select %p435, %s434, 1
        %s437 = smul.addr %s436, 8
        %s438 = scalar_lea.vmem %s2, %s437
        %s439 = smul.u32 2, %s29
        %s440 = smul.u32 2, %s29
        %p441 = scmp.lt.s32.totalorder %s440, 1
        %s442 = scalar_select %p441, %s440, 1
        %s443 = smul.addr %s442, 8
        %s444 = scalar_lea.vmem %s3, %s443
        %s445 = smul.u32 2, %s29
        %s446 = smul.u32 2, %s29
        %s447 = sadd.s32 %s28, %s29
        %p448 = scmp.lt.s32.totalorder %s447, 1
        %s449 = scalar_select %p448, %s447, 1
        %s450 = smul.addr %s449, 2
        %s451 = smul.addr %s450, 8
        %s452 = scalar_lea.vmem %s8, %s451
        %s453 = sadd.s32 %s28, %s29
        %s454 = sadd.s32 %s28, %s29
        %p455 = scmp.lt.s32.totalorder %s454, 1
        %s456 = scalar_select %p455, %s454, 1
        %s457 = smul.addr %s456, 2
        %s458 = smul.addr %s457, 8
        %s459 = scalar_lea.vmem %s9, %s458
        %s460 = sadd.s32 %s28, %s29
        %v461 = vld [vmem:[%s423] sm:$0xff]
        %v462 = vld [vmem:[%s423 + $0x8] sm:$0xff]
        %v463 = vld [vmem:[%s423 + $0x10] sm:$0xff]
        %v464 = vld [vmem:[%s423 + $0x18] sm:$0xff]
        %v465 = vld [vmem:[%s423 + $0x20] sm:$0xff]
        %v466 = vld [vmem:[%s423 + $0x28] sm:$0xff]
        %v467 = vld [vmem:[%s423 + $0x30] sm:$0xff]
        %v468 = vld [vmem:[%s423 + $0x38] sm:$0xff]
        %v469 = vld [vmem:[%s438] sm:$0xff]
        %v470 = vld [vmem:[%s438 + $0x8] sm:$0xff]
        %vm471 = vcmask 64512
        %v473 = vsel %vm471, %v461, 0
        %v476 = vsel %vm471, %v462, 0
        %v479 = vsel %vm471, %v463, 0
        %v482 = vsel %vm471, %v464, 0
        %v485 = vsel %vm471, %v465, 0
        %v488 = vsel %vm471, %v466, 0
        %v491 = vsel %vm471, %v467, 0
        %v494 = vsel %vm471, %v468, 0
        %496 = vmatpush.msra.mxu0 0.0
        %497 = vmatpush.msra.mxu0 0.0
        %498 = vmatpush.msra.mxu0 0.0
        %499 = vmatpush.msra.mxu0 0.0
        %500 = vmatpush.msra.mxu0 0.0
        %501 = vmatpush.msra.mxu0 0.0
        %502 = vmatpush.msra.mxu0 0.0
        %503 = vmatpush.msra.mxu0 0.0
        %504 = vmatpush.msra.mxu0 0.0
        %505 = vmatpush.msra.mxu0 0.0
        %506 = vmatpush.msra.mxu0 0.0
        %507 = vmatpush.msra.mxu0 0.0
        %508 = vmatpush.msra.mxu0 0.0
        %509 = vmatpush.msra.mxu0 0.0
        %510 = vmatpush.msra.mxu0 0.0
        %511 = vmatpush.msra.mxu0 %v469
        %512 = vmatmul.f32.gmra.mxu0 %v473
        %v513 = vpop.f32.mrf.mxu0
        %v514 = vadd.f32 0.0, %v513
        %515 = vmatmul.f32.gmra.mxu0 %v476
        %v516 = vpop.f32.mrf.mxu0
        %v517 = vadd.f32 0.0, %v516
        %518 = vmatmul.f32.gmra.mxu0 %v479
        %v519 = vpop.f32.mrf.mxu0
        %v520 = vadd.f32 0.0, %v519
        %521 = vmatmul.f32.gmra.mxu0 %v482
        %v522 = vpop.f32.mrf.mxu0
        %v523 = vadd.f32 0.0, %v522
        %524 = vmatmul.f32.gmra.mxu0 %v485
        %v525 = vpop.f32.mrf.mxu0
        %v526 = vadd.f32 0.0, %v525
        %527 = vmatmul.f32.gmra.mxu0 %v488
        %v528 = vpop.f32.mrf.mxu0
        %v529 = vadd.f32 0.0, %v528
        %530 = vmatmul.f32.gmra.mxu0 %v491
        %v531 = vpop.f32.mrf.mxu0
        %v532 = vadd.f32 0.0, %v531
        %533 = vmatmul.f32.gmra.mxu0 %v494
        %v534 = vpop.f32.mrf.mxu0
        %v535 = vadd.f32 0.0, %v534
        %536 = vdwg.mxu0
        %537 = vmatpush.msra.mxu0 0.0
        %538 = vmatpush.msra.mxu0 0.0
        %539 = vmatpush.msra.mxu0 0.0
        %540 = vmatpush.msra.mxu0 0.0
        %541 = vmatpush.msra.mxu0 0.0
        %542 = vmatpush.msra.mxu0 0.0
        %543 = vmatpush.msra.mxu0 0.0
        %544 = vmatpush.msra.mxu0 0.0
        %545 = vmatpush.msra.mxu0 0.0
        %546 = vmatpush.msra.mxu0 0.0
        %547 = vmatpush.msra.mxu0 0.0
        %548 = vmatpush.msra.mxu0 0.0
        %549 = vmatpush.msra.mxu0 0.0
        %550 = vmatpush.msra.mxu0 0.0
        %551 = vmatpush.msra.mxu0 0.0
        %552 = vmatpush.msra.mxu0 %v470
        %553 = vmatmul.f32.gmra.mxu0 %v473
        %v554 = vpop.f32.mrf.mxu0
        %v555 = vadd.f32 0.0, %v554
        %556 = vmatmul.f32.gmra.mxu0 %v476
        %v557 = vpop.f32.mrf.mxu0
        %v558 = vadd.f32 0.0, %v557
        %559 = vmatmul.f32.gmra.mxu0 %v479
        %v560 = vpop.f32.mrf.mxu0
        %v561 = vadd.f32 0.0, %v560
        %562 = vmatmul.f32.gmra.mxu0 %v482
        %v563 = vpop.f32.mrf.mxu0
        %v564 = vadd.f32 0.0, %v563
        %565 = vmatmul.f32.gmra.mxu0 %v485
        %v566 = vpop.f32.mrf.mxu0
        %v567 = vadd.f32 0.0, %v566
        %568 = vmatmul.f32.gmra.mxu0 %v488
        %v569 = vpop.f32.mrf.mxu0
        %v570 = vadd.f32 0.0, %v569
        %571 = vmatmul.f32.gmra.mxu0 %v491
        %v572 = vpop.f32.mrf.mxu0
        %v573 = vadd.f32 0.0, %v572
        %574 = vmatmul.f32.gmra.mxu0 %v494
        %v575 = vpop.f32.mrf.mxu0
        %v576 = vadd.f32 0.0, %v575
        %577 = vdwg.mxu0
        %v578 = vld [vmem:[%s444] sm:$0xff]
        %v579 = vld [vmem:[%s444 + $0x8] sm:$0xff]
        %v580 = vld [vmem:[%s4] sm:$0xff]
        %v581 = vmul.f32 %v514, %v578
        %v582 = vmul.f32 %v555, %v579
        %v583 = vmul.f32 %v517, %v578
        %v584 = vmul.f32 %v558, %v579
        %v585 = vmul.f32 %v520, %v578
        %v586 = vmul.f32 %v561, %v579
        %v587 = vmul.f32 %v523, %v578
        %v588 = vmul.f32 %v564, %v579
        %v589 = vmul.f32 %v526, %v578
        %v590 = vmul.f32 %v567, %v579
        %v591 = vmul.f32 %v529, %v578
        %v592 = vmul.f32 %v570, %v579
        %v593 = vmul.f32 %v532, %v578
        %v594 = vmul.f32 %v573, %v579
        %v595 = vmul.f32 %v535, %v578
        %v596 = vmul.f32 %v576, %v579
        %vm597 = vcmask 523264
        %v599 = vsel %vm597, %v580, 0
        %601 = vmatpush.msra.mxu0 0.0
        %602 = vmatpush.msra.mxu0 0.0
        %603 = vmatpush.msra.mxu0 0.0
        %604 = vmatpush.msra.mxu0 0.0
        %605 = vmatpush.msra.mxu0 0.0
        %606 = vmatpush.msra.mxu0 0.0
        %607 = vmatpush.msra.mxu0 0.0
        %608 = vmatpush.msra.mxu0 0.0
        %609 = vmatpush.msra.mxu0 %v595
        %610 = vmatpush.msra.mxu0 %v593
        %611 = vmatpush.msra.mxu0 %v591
        %612 = vmatpush.msra.mxu0 %v589
        %613 = vmatpush.msra.mxu0 %v587
        %614 = vmatpush.msra.mxu0 %v585
        %615 = vmatpush.msra.mxu0 %v583
        %616 = vmatpush.msra.mxu0 %v581
        %617 = vmatmul.f32.gmra.mxu0 %v599
        %v618 = vpop.f32.mrf.mxu0
        %v619 = vadd.f32 0.0, %v618
        %620 = vdwg.mxu0
        %621 = vmatpush.msra.mxu0 0.0
        %622 = vmatpush.msra.mxu0 0.0
        %623 = vmatpush.msra.mxu0 0.0
        %624 = vmatpush.msra.mxu0 0.0
        %625 = vmatpush.msra.mxu0 0.0
        %626 = vmatpush.msra.mxu0 0.0
        %627 = vmatpush.msra.mxu0 0.0
        %628 = vmatpush.msra.mxu0 0.0
        %629 = vmatpush.msra.mxu0 %v596
        %630 = vmatpush.msra.mxu0 %v594
        %631 = vmatpush.msra.mxu0 %v592
        %632 = vmatpush.msra.mxu0 %v590
        %633 = vmatpush.msra.mxu0 %v588
        %634 = vmatpush.msra.mxu0 %v586
        %635 = vmatpush.msra.mxu0 %v584
        %636 = vmatpush.msra.mxu0 %v582
        %637 = vmatmul.f32.gmra.mxu0 %v599
        %v638 = vpop.f32.mrf.mxu0
        %v639 = vadd.f32 0.0, %v638
        %640 = vdwg.mxu0
        %641 = vst [vmem:[%s402] sm:$0xff] %v619
        %642 = vst [vmem:[%s402 + $0x8] sm:$0xff] %v639
        %v643 = vld [vmem:[%s5] sm:$0xff]
        %v644 = vld [vmem:[%s5 + $0x8] sm:$0xff]
        %v645 = vld [vmem:[%s432] sm:$0xff]
        %v646 = vld [vmem:[%s432 + $0x8] sm:$0xff]
        %v647 = vld [vmem:[%s6] sm:$0xff]
        %v648 = vld [vmem:[%s6 + $0x8] sm:$0xff]
        %v650 = vsel %vm471, %v647, 0
        %v653 = vsel %vm471, %v648, 0
        %655 = vmatpush.msra.mxu0 0.0
        %656 = vmatpush.msra.mxu0 0.0
        %657 = vmatpush.msra.mxu0 0.0
        %658 = vmatpush.msra.mxu0 0.0
        %659 = vmatpush.msra.mxu0 0.0
        %660 = vmatpush.msra.mxu0 0.0
        %661 = vmatpush.msra.mxu0 0.0
        %662 = vmatpush.msra.mxu0 0.0
        %663 = vmatpush.msra.mxu0 0.0
        %664 = vmatpush.msra.mxu0 0.0
        %665 = vmatpush.msra.mxu0 0.0
        %666 = vmatpush.msra.mxu0 0.0
        %667 = vmatpush.msra.mxu0 0.0
        %668 = vmatpush.msra.mxu0 0.0
        %669 = vmatpush.msra.mxu0 0.0
        %670 = vmatpush.msra.mxu0 %v619
        %671 = vmatmul.f32.gmra.mxu0 %v650
        %v672 = vpop.f32.mrf.mxu0
        %v673 = vadd.f32 0.0, %v672
        %674 = vmatmul.f32.gmra.mxu0 %v653
        %v675 = vpop.f32.mrf.mxu0
        %v676 = vadd.f32 0.0, %v675
        %677 = vdwg.mxu0
        %678 = vmatpush.msra.mxu0 0.0
        %679 = vmatpush.msra.mxu0 0.0
        %680 = vmatpush.msra.mxu0 0.0
        %681 = vmatpush.msra.mxu0 0.0
        %682 = vmatpush.msra.mxu0 0.0
        %683 = vmatpush.msra.mxu0 0.0
        %684 = vmatpush.msra.mxu0 0.0
        %685 = vmatpush.msra.mxu0 0.0
        %686 = vmatpush.msra.mxu0 0.0
        %687 = vmatpush.msra.mxu0 0.0
        %688 = vmatpush.msra.mxu0 0.0
        %689 = vmatpush.msra.mxu0 0.0
        %690 = vmatpush.msra.mxu0 0.0
        %691 = vmatpush.msra.mxu0 0.0
        %692 = vmatpush.msra.mxu0 0.0
        %693 = vmatpush.msra.mxu0 %v639
        %694 = vmatmul.f32.gmra.mxu0 %v650
        %v695 = vpop.f32.mrf.mxu0
        %v696 = vadd.f32 0.0, %v695
        %697 = vmatmul.f32.gmra.mxu0 %v653
        %v698 = vpop.f32.mrf.mxu0
        %v699 = vadd.f32 0.0, %v698
        %700 = vdwg.mxu0
        %v702 = vsel %vm471, %v643, 0
        %v705 = vsel %vm471, %v644, 0
        %707 = vmatpush.msra.mxu0 0.0
        %708 = vmatpush.msra.mxu0 0.0
        %709 = vmatpush.msra.mxu0 0.0
        %710 = vmatpush.msra.mxu0 0.0
        %711 = vmatpush.msra.mxu0 0.0
        %712 = vmatpush.msra.mxu0 0.0
        %713 = vmatpush.msra.mxu0 0.0
        %714 = vmatpush.msra.mxu0 0.0
        %715 = vmatpush.msra.mxu0 0.0
        %716 = vmatpush.msra.mxu0 0.0
        %717 = vmatpush.msra.mxu0 0.0
        %718 = vmatpush.msra.mxu0 0.0
        %719 = vmatpush.msra.mxu0 0.0
        %720 = vmatpush.msra.mxu0 0.0
        %721 = vmatpush.msra.mxu0 0.0
        %722 = vmatpush.msra.mxu0 %v645
        %723 = vmatmul.f32.gmra.mxu0 %v702
        %v724 = vpop.f32.mrf.mxu0
        %v725 = vadd.f32 %v673, %v724
        %726 = vmatmul.f32.gmra.mxu0 %v705
        %v727 = vpop.f32.mrf.mxu0
        %v728 = vadd.f32 %v676, %v727
        %729 = vdwg.mxu0
        %730 = vmatpush.msra.mxu0 0.0
        %731 = vmatpush.msra.mxu0 0.0
        %732 = vmatpush.msra.mxu0 0.0
        %733 = vmatpush.msra.mxu0 0.0
        %734 = vmatpush.msra.mxu0 0.0
        %735 = vmatpush.msra.mxu0 0.0
        %736 = vmatpush.msra.mxu0 0.0
        %737 = vmatpush.msra.mxu0 0.0
        %738 = vmatpush.msra.mxu0 0.0
        %739 = vmatpush.msra.mxu0 0.0
        %740 = vmatpush.msra.mxu0 0.0
        %741 = vmatpush.msra.mxu0 0.0
        %742 = vmatpush.msra.mxu0 0.0
        %743 = vmatpush.msra.mxu0 0.0
        %744 = vmatpush.msra.mxu0 0.0
        %745 = vmatpush.msra.mxu0 %v646
        %746 = vmatmul.f32.gmra.mxu0 %v702
        %v747 = vpop.f32.mrf.mxu0
        %v748 = vadd.f32 %v696, %v747
        %749 = vmatmul.f32.gmra.mxu0 %v705
        %v750 = vpop.f32.mrf.mxu0
        %v751 = vadd.f32 %v699, %v750
        %752 = vdwg.mxu0
        %v753 = vadd.f32 %v725, %v748
        %754 = vadd.xlane.f32.xlu0 %v753
        %v755 = vpop.xlane.xlu0 %754
        %v756 = vadd.f32 %v728, %v751
        %757 = vadd.xlane.f32.xlu0 %v756
        %v758 = vpop.xlane.xlu0 %757
        %vm759 = vcmask 7168
        %760 = vst.msk [vmem:[%s452] sm:$0xff] %vm759, %v755
        %761 = vst.msk [vmem:[%s452 + $0x8] sm:$0xff] %vm759, %v758
        %v762 = vmul.f32 %v725, %v725
        %v763 = vmul.f32 %v748, %v748
        %v764 = vmul.f32 %v728, %v728
        %v765 = vmul.f32 %v751, %v751
        %v766 = vadd.f32 %v762, %v763
        %767 = vadd.xlane.f32.xlu0 %v766
        %v768 = vpop.xlane.xlu0 %767
        %v769 = vadd.f32 %v764, %v765
        %770 = vadd.xlane.f32.xlu0 %v769
        %v771 = vpop.xlane.xlu0 %770
        %772 = vst.msk [vmem:[%s459] sm:$0xff] %vm759, %v768
        %773 = vst.msk [vmem:[%s459 + $0x8] sm:$0xff] %vm759, %v771
        %s774 = sand.u32 %s215, 1
        %s775 = scalar_lea.sflag [#allocation3], %s774
        %s776 = sand.u32 %s215, 1
        %s777 = smul.addr %s776, 16
        %s778 = scalar_lea.vmem [#allocation2], %s777
        %s779 = sadd.s32 %s28, %s29
        %p780 = scmp.lt.s32.totalorder %s779, 1
        %s781 = scalar_select %p780, %s779, 1
        %s782 = smul.addr %s781, 2
        %s783 = smul.addr %s782, 8
        %s784 = scalar_lea.vmem %s8, %s783
        %s785 = sadd.s32 %s28, %s29
        %p786 = scmp.lt.s32.totalorder %s785, 1
        %s787 = scalar_select %p786, %s785, 1
        %s788 = smul.addr %s787, 2
        %s789 = smul.addr %s788, 8
        %s790 = scalar_lea.vmem %s9, %s789
        // Predicated region
        $region49: #{tpu_custom_call.1} parent=47 // pred_check
          %p791 = pneg %p225
        $region50: #{tpu_custom_call.1} parent=47 // pred_check_branch
          %793 = sbr.rel (%p791) target = $region52
        $region51: #{tpu_custom_call.1} parent=47 // pred_region
          %s794 = smul.u32 2, %s29
          %796 = vsyncadd %s775, 0
          %s797 = smul.addr %s28, 2
          %s798 = sadd.s32 %s794, %s797
          %s799 = smul.addr %s798, 8
          %s800 = scalar_lea.hbm %s7, %s799
          %s802 = sshll.u32 %s778, 4
          %s803 = int_to_ptr.vmem [resolvable:$true] %s802
          %s804 = sshll.u32 %s800, 4
          %s805 = int_to_ptr.hbm [resolvable:$true] %s804
          %807 = dma.vmem_to_hbm [thread:$0]  %s803, 256, %s805, %s775
        $region52: #{tpu_custom_call.1} parent=47 // pred_fallthru
          _
        // Predicated region
        $region53: #{tpu_custom_call.1} parent=47 // pred_check
          %p808 = pneg %p253
        $region54: #{tpu_custom_call.1} parent=47 // pred_check_branch
          %810 = sbr.rel (%p808) target = $region56
        $region55: #{tpu_custom_call.1} parent=47 // pred_region
          %s811 = sadd.s32 %s28, %s29
        $region56: #{tpu_custom_call.1} parent=47 // pred_fallthru
          _
        // Predicated region
        $region57: #{tpu_custom_call.1} parent=47 // pred_check
          %p812 = pneg %p281
        $region58: #{tpu_custom_call.1} parent=47 // pred_check_branch
          %814 = sbr.rel (%p812) target = $region60
        $region59: #{tpu_custom_call.1} parent=47 // pred_region
          %s815 = sadd.s32 %s28, %s29
        $region60: #{tpu_custom_call.1} parent=47 // pred_fallthru
          _
      $region48: #{tpu_custom_call.1} parent=5 // pred_fallthru
        _
      %p816 = scmp.le.s32.totalorder 2, %s19
      // Predicated region
      $region61: #{tpu_custom_call.1} parent=5 // pred_check
        %p817 = pneg %p816
      $region62: #{tpu_custom_call.1} parent=5 // pred_check_branch
        %819 = sbr.rel (%p817) target = $region64
      $region63: #{tpu_custom_call.1} parent=5 // pred_region
        %s820 = ssub.s32 %s19, 2
        // Predicated region
        $region65: #{tpu_custom_call.1} parent=63 // pred_check
          %p821 = pneg %p231
        $region66: #{tpu_custom_call.1} parent=63 // pred_check_branch
          %823 = sbr.rel (%p821) target = $region68
        $region67: #{tpu_custom_call.1} parent=63 // pred_region
          %s824 = sand.u32 %s216, 1
          %s825 = scalar_lea.sflag [#allocation3], %s824
          %s826 = sand.u32 %s216, 1
          %s827 = smul.addr %s826, 16
          %s828 = scalar_lea.vmem [#allocation2], %s827
          %830 = dma.done %s825, 256
        $region68: #{tpu_custom_call.1} parent=63 // pred_fallthru
          _
        // Predicated region
        $region69: #{tpu_custom_call.1} parent=63 // pred_check
          %p831 = pneg %p259
        $region70: #{tpu_custom_call.1} parent=63 // pred_check_branch
          %833 = sbr.rel (%p831) target = $region72
        $region71: #{tpu_custom_call.1} parent=63 // pred_region
          %s834 = sadd.s32 %s30, %s31
          %p835 = scmp.lt.s32.totalorder %s834, 1
          %s836 = scalar_select %p835, %s834, 1
          %s837 = smul.addr %s836, 2
          %s838 = smul.addr %s837, 8
          %s839 = scalar_lea.vmem %s8, %s838
        $region72: #{tpu_custom_call.1} parent=63 // pred_fallthru
          _
        // Predicated region
        $region73: #{tpu_custom_call.1} parent=63 // pred_check
          %p840 = pneg %p287
        $region74: #{tpu_custom_call.1} parent=63 // pred_check_branch
          %842 = sbr.rel (%p840) target = $region76
        $region75: #{tpu_custom_call.1} parent=63 // pred_region
          %s843 = sadd.s32 %s30, %s31
          %p844 = scmp.lt.s32.totalorder %s843, 1
          %s845 = scalar_select %p844, %s843, 1
          %s846 = smul.addr %s845, 2
          %s847 = smul.addr %s846, 8
          %s848 = scalar_lea.vmem %s9, %s847
        $region76: #{tpu_custom_call.1} parent=63 // pred_fallthru
          _
      $region64: #{tpu_custom_call.1} parent=5 // pred_fallthru
        _
    $region6: #{tpu_custom_call.1} parent=1 // loop_footer
      %s23 = sadd.s32 1, %s19
    $region7: #{tpu_custom_call.1} parent=1 // loop_footer_branch
      %18 = sbr.rel target = $region3
    $region8: #{tpu_custom_call.1} parent=1 // loop_exit
      _
    %849 = vsyncpa [#allocation3], 1
    %s850 = scalar_lea.sflag [#allocation3], 1
    %851 = vsyncpa %s850, 1

</llo_original>
